<compile_context>
chip_gen: v5e
topology: v5e:2x2
jax: 0.10.0
libtpu: 0.0.40
codegen_flags: <defaults>
</compile_context>

<pallas_src>
import jax
import jax.numpy as jnp
from jax.experimental import pallas as pl
from jax.experimental.pallas import tpu as pltpu

_IGNORE_INDEX = -100  # F.nll_loss default


def _elbo_partials_kernel(logp_ref, tgt_ref, out_ref):
    """Accumulate per-chunk [sum of picked log-probs, valid count] per class."""
    t = pl.program_id(1)

    @pl.when(t == 0)
    def _():
        out_ref[...] = jnp.zeros_like(out_ref)

    logp = logp_ref[...].astype(jnp.float32)           # (TM, C)
    tgt = tgt_ref[...]                                  # (TM, 1) int32
    c = logp.shape[1]
    cls = jax.lax.broadcasted_iota(jnp.int32, (1, c), 1)
    onehot = cls == tgt                                 # (TM, C); all-False for ignore_index / padded rows
    picked = jnp.where(onehot, logp, jnp.float32(0.0))  # garbage rows masked by targets
    psum = jnp.sum(picked, axis=0, keepdims=True)                        # (1, C)
    pcnt = jnp.sum(onehot.astype(jnp.float32), axis=0, keepdims=True)    # (1, C)
    out_ref[...] += jnp.concatenate([psum, pcnt], axis=0)                # (2, C)


def _round_up(x, m):
    return (x + m - 1) // m * m


def _cdiv(a, b):
    return -(-a // b)


def elbo_loss(log_probs, targets, kl, beta, train_size, *,
              max_rows_per_tile=None, num_chunks=2):
    """Pallas implementation of ELBO.forward(input, target, kl, beta)."""
    lp = jnp.asarray(log_probs)
    if not (lp.dtype == jnp.float32 or lp.dtype == jnp.bfloat16):
        lp = lp.astype(jnp.float32)
    assert lp.ndim == 2, "input must be (N, C) log-probabilities"
    n, c = lp.shape
    itemsize = lp.dtype.itemsize
    row_align = 8 if itemsize == 4 else (16 if itemsize == 2 else 32)

    # --- Tile sizing from the lane-padded VMEM footprint (not HBM bytes). ---
    c_lanes = _round_up(c, 128)
    vmem_per_row = c_lanes * itemsize + 128 * 4          # log-prob tile + target col
    vmem_budget = 24 * 1024 * 1024                       # double-buffered inputs, v7x-safe
    rows_fit = max(row_align, vmem_budget // (2 * vmem_per_row))
    # Aim for ~2 MiB of HBM payload per grid step (amortize ~0.35 us/step).
    rows_for_hbm = max(row_align, _cdiv(2 * 1024 * 1024, max(c * itemsize, 1)))
    tm = min(rows_fit, rows_for_hbm)
    if max_rows_per_tile is not None:
        tm = min(tm, int(max_rows_per_tile))
    tm = min(tm, _round_up(n, row_align))
    tm = max(row_align, (tm // row_align) * row_align)

    num_tiles = _cdiv(n, tm)
    nch = max(1, min(int(num_chunks), num_tiles))        # parallel chunks (2 TCs on v7x)
    tpc = _cdiv(num_tiles, nch)                          # row tiles per chunk
    grid_rows = nch * tpc * tm

    # Only the tiny target column is padded (ignore_index).  Padded rows (and
    # any fully out-of-range tail tiles) contribute to neither the numerator
    # nor the denominator; the big log-prob array is NOT copied or padded.
    tg = jnp.pad(jnp.asarray(targets, jnp.int32).reshape(n, 1),
                 ((0, grid_rows - n), (0, 0)), constant_values=_IGNORE_INDEX)

    last_block = num_tiles - 1  # clamp log-prob block index for tail tiles

    lp_spec = pl.BlockSpec(
        (tm, c), lambda ck, t: (jnp.minimum(ck * tpc + t, last_block), 0))
    tg_spec = pl.BlockSpec((tm, 1), lambda ck, t: (ck * tpc + t, 0))
    out_spec = pl.BlockSpec((None, 2, c), lambda ck, t: (ck, 0, 0))

    partials = pl.pallas_call(
        _elbo_partials_kernel,
        out_shape=jax.ShapeDtypeStruct((nch, 2, c), jnp.float32),
        grid=(nch, tpc),
        in_specs=[lp_spec, tg_spec],
        out_specs=out_spec,
        compiler_params=pltpu.CompilerParams(
            dimension_semantics=("parallel", "arbitrary"),
            vmem_limit_bytes=32 * 1024 * 1024,
        ),
    )(lp, tg)

    # Tiny scalar epilogue (combine the per-chunk partials):
    picked_sum = jnp.sum(partials[:, 0, :])
    valid_cnt = jnp.sum(partials[:, 1, :])
    # NaN when every target is ignore_index -- matches F.nll_loss(mean).
    nll_mean = -(picked_sum / valid_cnt)
    return (nll_mean * jnp.float32(train_size)
            + jnp.asarray(beta, jnp.float32) * jnp.asarray(kl, jnp.float32))


if __name__ == "__main__":
    key = jax.random.PRNGKey(0)
    k_logits, k_tgt, k_kl = jax.random.split(key, 3)

    n, c = 8, 10                     # small batch, 10 digit classes
    train_size = 60000.0             # MNIST-style train_size from __init__

    logits = jax.random.normal(k_logits, (n, c), dtype=jnp.float32)
    log_probs = jax.nn.log_softmax(logits, axis=-1)   # nll_loss expects log-probs
    targets = jax.random.randint(k_tgt, (n,), 0, c, dtype=jnp.int32)
    kl = jax.random.uniform(k_kl, (), dtype=jnp.float32) * 100.0
    beta = jnp.float32(0.1)

    loss = elbo_loss(log_probs, targets, kl, beta, train_size)
    jax.block_until_ready(loss)

    ref = -jnp.mean(log_probs[jnp.arange(n), targets]) * train_size + beta * kl
    assert jnp.allclose(loss, ref, rtol=1e-5, atol=1e-4), (loss, ref)

    # Second check: multi-tile, multi-chunk grid with a ragged last tile and a
    # fully out-of-range tail tile (num_tiles=3 split over 2 chunks of 2 tiles),
    # exercising the ignore_index masking and the clamped block index.
    n2 = 40
    logits2 = jax.random.normal(jax.random.PRNGKey(1), (n2, c), dtype=jnp.float32)
    log_probs2 = jax.nn.log_softmax(logits2, axis=-1)
    targets2 = jax.random.randint(jax.random.PRNGKey(2), (n2,), 0, c,
                                  dtype=jnp.int32)
    loss2 = elbo_loss(log_probs2, targets2, kl, beta, train_size,
                      max_rows_per_tile=16, num_chunks=2)
    jax.block_until_ready(loss2)
    ref2 = (-jnp.mean(log_probs2[jnp.arange(n2), targets2]) * train_size
            + beta * kl)
    assert jnp.allclose(loss2, ref2, rtol=1e-5, atol=1e-4), (loss2, ref2)

    print("KERNEL_OK")
</pallas_src>

<mosaic_0001>
module attributes {stable_mosaic.version = 11 : i64} {
  func.func @_elbo_partials_kernel(%arg0: i32, %arg1: i32, %arg2: memref<8x10xf32, #tpu.memory_space<vmem>>, %arg3: memref<8x1xi32, #tpu.memory_space<vmem>>, %arg4: memref<1x2x10xf32, #tpu.memory_space<vmem>>) attributes {dimension_semantics = [#tpu.dimension_semantics<parallel>, #tpu.dimension_semantics<arbitrary>], iteration_bounds = array<i64: 1, 1>, scalar_prefetch = 0 : i64, scratch_operands = 0 : i64, tpu.core_type = #tpu.core_type<tc>, window_params = [{transform_indices = @transform_0, window_bounds = array<i64: 8, 10>}, {transform_indices = @transform_1, window_bounds = array<i64: 8, 1>}, {transform_indices = @transform_2, window_bounds = array<i64: 1, 2, 10>}]} {
    %c0_i32 = arith.constant 0 : i32
    %0 = arith.cmpi eq, %arg1, %c0_i32 : i32
    %1 = arith.extui %0 : i1 to i32
    %c0_i32_0 = arith.constant 0 : i32
    %2 = arith.cmpi ne, %1, %c0_i32_0 : i32
    scf.if %2 {
      %cst_12 = arith.constant 0.000000e+00 : f32
      %24 = vector.broadcast %cst_12 : f32 to vector<2x10xf32>
      %c0_13 = arith.constant 0 : index
      %c0_14 = arith.constant 0 : index
      %c0_15 = arith.constant 0 : index
      %25 = vector.load %arg4[%c0_13, %c0_14, %c0_15] : memref<1x2x10xf32, #tpu.memory_space<vmem>>, vector<1x2x10xf32>
      %26 = vector.shape_cast %25 : vector<1x2x10xf32> to vector<2x10xf32>
      %27 = vector.shape_cast %24 : vector<2x10xf32> to vector<1x2x10xf32>
      tpu.vector_store %arg4[%c0_13, %c0_14, %c0_15], %27 {strides = array<i32>} : memref<1x2x10xf32, #tpu.memory_space<vmem>>, vector<1x2x10xf32>,
    } else {
    }
    %c0 = arith.constant 0 : index
    %c0_1 = arith.constant 0 : index
    %3 = vector.load %arg2[%c0, %c0_1] : memref<8x10xf32, #tpu.memory_space<vmem>>, vector<8x10xf32>
    %c0_2 = arith.constant 0 : index
    %c0_3 = arith.constant 0 : index
    %4 = vector.load %arg3[%c0_2, %c0_3] : memref<8x1xi32, #tpu.memory_space<vmem>>, vector<8x1xi32>
    %5 = tpu.iota {dimensions = array<i32: 1>} : vector<1x10xi32>
    %6 = vector.broadcast %5 : vector<1x10xi32> to vector<8x10xi32>
    %7 = vector.broadcast %4 : vector<8x1xi32> to vector<8x10xi32>
    %8 = arith.cmpi eq, %6, %7 : vector<8x10xi32>
    %cst = arith.constant 0.000000e+00 : f32
    %9 = vector.broadcast %cst : f32 to vector<8x10xf32>
    %10 = arith.select %8, %3, %9 : vector<8x10xi1>, vector<8x10xf32>
    %cst_4 = arith.constant dense<0.000000e+00> : vector<10xf32>
    %11 = vector.multi_reduction <add>, %10, %cst_4 [0] : vector<8x10xf32> to vector<10xf32>
    %12 = vector.shape_cast %11 : vector<10xf32> to vector<1x10xf32>
    %13 = arith.extui %8 : vector<8x10xi1> to vector<8x10xi32>
    %14 = arith.sitofp %13 : vector<8x10xi32> to vector<8x10xf32>
    %cst_5 = arith.constant dense<0.000000e+00> : vector<10xf32>
    %15 = vector.multi_reduction <add>, %14, %cst_5 [0] : vector<8x10xf32> to vector<10xf32>
    %16 = vector.shape_cast %15 : vector<10xf32> to vector<1x10xf32>
    %c0_6 = arith.constant 0 : index
    %c0_7 = arith.constant 0 : index
    %c0_8 = arith.constant 0 : index
    %17 = vector.load %arg4[%c0_6, %c0_7, %c0_8] : memref<1x2x10xf32, #tpu.memory_space<vmem>>, vector<1x2x10xf32>
    %18 = vector.shape_cast %17 : vector<1x2x10xf32> to vector<2x10xf32>
    %19 = tpu.concatenate %12, %16 in 0 : vector<1x10xf32>, vector<1x10xf32> -> vector<2x10xf32>
    %20 = arith.addf %18, %19 : vector<2x10xf32>
    %c0_9 = arith.constant 0 : index
    %c0_10 = arith.constant 0 : index
    %c0_11 = arith.constant 0 : index
    %21 = vector.load %arg4[%c0_9, %c0_10, %c0_11] : memref<1x2x10xf32, #tpu.memory_space<vmem>>, vector<1x2x10xf32>
    %22 = vector.shape_cast %21 : vector<1x2x10xf32> to vector<2x10xf32>
    %23 = vector.shape_cast %20 : vector<2x10xf32> to vector<1x2x10xf32>
    tpu.vector_store %arg4[%c0_9, %c0_10, %c0_11], %23 {strides = array<i32>} : memref<1x2x10xf32, #tpu.memory_space<vmem>>, vector<1x2x10xf32>,
    return
  }
  func.func @transform_0(%arg0: i32, %arg1: i32) -> (i32, i32) {
    %c1_i32 = arith.constant 1 : i32
    %0 = arith.muli %arg0, %c1_i32 : i32
    %1 = arith.addi %0, %arg1 : i32
    %c0_i32 = arith.constant 0 : i32
    %2 = arith.minsi %1, %c0_i32 : i32
    %c0_i32_0 = arith.constant 0 : i32
    %c0_i32_1 = arith.constant 0 : i32
    return %2, %c0_i32_0 : i32, i32
  }
  func.func @transform_1(%arg0: i32, %arg1: i32) -> (i32, i32) {
    %c1_i32 = arith.constant 1 : i32
    %0 = arith.muli %arg0, %c1_i32 : i32
    %1 = arith.addi %0, %arg1 : i32
    %c0_i32 = arith.constant 0 : i32
    %c0_i32_0 = arith.constant 0 : i32
    return %1, %c0_i32 : i32, i32
  }
  func.func @transform_2(%arg0: i32, %arg1: i32) -> (i32, i32, i32) {
    %c0_i32 = arith.constant 0 : i32
    %c0_i32_0 = arith.constant 0 : i32
    %c0_i32_1 = arith.constant 0 : i32
    return %arg0, %c0_i32, %c0_i32_0 : i32, i32, i32
  }
}

</mosaic_0001>

<llo_original>
// kernel: tpu_custom_call.1
$region0: #{tpu_custom_call.1}
  #allocation0 [shape = 'u32[]', space=smem, size = 0x4, offset = 0x4, fixed_abs, tag = 'smem constant byte address 0x4 - core index']
  #allocation1 [shape = 'u32[72,128]{1,0:T(1,128)}', space=vmem, size = 0x9000, scoped, tag = 'internal scratch']
  %s0 = inlined_call_operand.vmem [shape: f32[8,10], index: 0, kind: input, shape index: {}]
  %s1 = inlined_call_operand.vmem [shape: s32[8,1], index: 1, kind: input, shape index: {}]
  %s2 = inlined_call_operand.hbm [shape: f32[1,2,10], index: 2, kind: output, shape index: {}]
  %s3 = sld [smem:[#allocation0]]
  $region22: #{tpu_custom_call.1} parent=0
    _
  %s5 = ssub.s32 1, %s3
  %s6 = scalar_select 0, %s5, %s3
  $region1: #{tpu_custom_call.1} parent=0
    #allocation2 [shape = 'u8[1024]{0}', space=vmem, size = 0x400, scoped, tag = 'output window, operand 0, single buffered']
    #allocation3 [shape = 's32[1]{0}', space=sflag, size = 0x4, scoped, tag = 'scoped memory for tpu_custom_call.1']
    %7 = vsyncpa [#allocation3], 0
    // Predicated region
    $region2: #{tpu_custom_call.1} parent=1 // pred_check
      _
    $region3: #{tpu_custom_call.1} parent=1 // pred_check_branch
      %9 = sbr.rel (0) target = $region5
    $region4: #{tpu_custom_call.1} parent=1 // pred_region
      %s10 = sadd.s32 0, 0
      %p11 = scmp.lt.s32.totalorder %s10, 0
      %s12 = scalar_select %p11, %s10, 0
      %p13 = scmp.lt.s32.totalorder %s12, 0
      %s14 = scalar_select %p13, %s12, 0
      %s15 = smul.addr %s14, 8
      %s16 = scalar_lea.vmem %s0, %s15
      %s17 = sadd.s32 0, 0
      %p18 = scmp.lt.s32.totalorder %s17, 0
      %s19 = scalar_select %p18, %s17, 0
    $region5: #{tpu_custom_call.1} parent=1 // pred_fallthru
      _
    // Predicated region
    $region6: #{tpu_custom_call.1} parent=1 // pred_check
      _
    $region7: #{tpu_custom_call.1} parent=1 // pred_check_branch
      %21 = sbr.rel (0) target = $region9
    $region8: #{tpu_custom_call.1} parent=1 // pred_region
      %s22 = sadd.s32 0, 0
      %p23 = scmp.lt.s32.totalorder %s22, 0
      %s24 = scalar_select %p23, %s22, 0
      %s25 = smul.addr %s24, 8
      %s26 = scalar_lea.vmem %s1, %s25
      %s27 = sadd.s32 0, 0
    $region9: #{tpu_custom_call.1} parent=1 // pred_fallthru
      _
    %s28 = sadd.s32 0, 0
    %p29 = scmp.lt.s32.totalorder %s28, 0
    %s30 = scalar_select %p29, %s28, 0
    %p31 = scmp.lt.s32.totalorder %s30, 0
    %s32 = scalar_select %p31, %s30, 0
    %s33 = smul.addr %s32, 8
    %s34 = scalar_lea.vmem %s0, %s33
    %s35 = sadd.s32 0, 0
    %p36 = scmp.lt.s32.totalorder %s35, 0
    %s37 = scalar_select %p36, %s35, 0
    %s38 = smul.addr %s37, 8
    %s39 = scalar_lea.vmem %s1, %s38
    %s40 = sadd.s32 0, 0
    %p41 = scmp.lt.s32.totalorder %s40, 0
    %s42 = scalar_select %p41, %s40, 0
    %p43 = scmp.lt.s32.totalorder %s42, 0
    %s44 = scalar_select %p43, %s42, 0
    %s45 = smul.addr %s44, 8
    %s46 = scalar_lea.vmem %s0, %s45
    %s47 = sadd.s32 0, 0
    %p48 = scmp.lt.s32.totalorder %s47, 0
    %s49 = scalar_select %p48, %s47, 0
    %s50 = sadd.s32 0, 0
    %p51 = scmp.lt.s32.totalorder %s50, 0
    %s52 = scalar_select %p51, %s50, 0
    %s53 = smul.addr %s52, 8
    %s54 = scalar_lea.vmem %s1, %s53
    %s55 = sadd.s32 0, 0
    %p56 = scmp.eq.s32.totalorder 0, 0
    // Predicated region
    $region10: #{tpu_custom_call.1} parent=1 // pred_check
      %p57 = pneg %p56
    $region11: #{tpu_custom_call.1} parent=1 // pred_check_branch
      %59 = sbr.rel (%p57) target = $region13
    $region12: #{tpu_custom_call.1} parent=1 // pred_region
      %vm60 = vcmask 74752
      %61 = vst.msk [vmem:[#allocation2] sm:$0x3] %vm60, 0.0
    $region13: #{tpu_custom_call.1} parent=1 // pred_fallthru
      _
    %v62 = vld [vmem:[%s46] sm:$0xff]
    %v63 = vld [vmem:[%s54] sm:$0xff]
    %v64 = vlaneseq
    %v65 = vand.u32 %v64, 127
    %66 = vset.pattern.permute.xlu0 0
    %67 = vperm.xlu0 %66, %v63
    %v68 = vpop.permute.xlu0 %67
    %vm69 = vcmp.eq.s32.totalorder %v65, %v68
    %v70 = vsel %vm69, %v62, 0.0
    %vm71 = vcmask 80896
    %v72 = vsel %vm71, %v70, 0.0
    %v73 = vrot.slane %v72, 4
    %v74 = vadd.f32 %v72, %v73
    %v75 = vrot.slane %v74, 2
    %v76 = vadd.f32 %v74, %v75
    %v77 = vrot.slane %v76, 1
    %v78 = vadd.f32 %v76, %v77
    %v79 = vsel %vm69, 1, 0
    %v80 = vcvt.s32.f32 %v79
    %v81 = vsel %vm71, %v80, 0.0
    %v82 = vrot.slane %v81, 4
    %v83 = vadd.f32 %v81, %v82
    %v84 = vrot.slane %v83, 2
    %v85 = vadd.f32 %v83, %v84
    %v86 = vrot.slane %v85, 1
    %v87 = vadd.f32 %v85, %v86
    %v88 = vld [vmem:[#allocation2] sm:$0x3]
    %vm89 = vcmask 1040384
    %v90 = vsel %vm89, %v78, %v87
    %v91 = vadd.f32 %v88, %v90
    %vm92 = vcmask 74752
    %93 = vst.msk [vmem:[#allocation2] sm:$0x3] %vm92, %v91
    // Predicated region
    $region14: #{tpu_custom_call.1} parent=1 // pred_check
      _
    $region15: #{tpu_custom_call.1} parent=1 // pred_check_branch
      %95 = sbr.rel (0) target = $region17
    $region16: #{tpu_custom_call.1} parent=1 // pred_region
      %97 = vsyncadd [#allocation3], 0
      %s99 = sshll.u32 [#allocation2], 4
      %s100 = int_to_ptr.vmem [resolvable:$true] %s99
      %s101 = sshll.u32 %s2, 4
      %s102 = int_to_ptr.hbm [resolvable:$true] %s101
      %104 = dma.vmem_to_hbm [thread:$0]  %s100, 32, %s102, [#allocation3]
    $region17: #{tpu_custom_call.1} parent=1 // pred_fallthru
      _
    // Predicated region
    $region18: #{tpu_custom_call.1} parent=1 // pred_check
      _
    $region19: #{tpu_custom_call.1} parent=1 // pred_check_branch
      %106 = sbr.rel (0) target = $region21
    $region20: #{tpu_custom_call.1} parent=1 // pred_region
      %108 = dma.done [#allocation3], 32
    $region21: #{tpu_custom_call.1} parent=1 // pred_fallthru
      _
    %109 = vsyncpa [#allocation3], 1

</llo_original>
